<compile_context>
chip_gen: v7x
topology: tpu7x:2x2x1
jax: 0.10.0
libtpu: 0.0.40
codegen_flags: <defaults>
</compile_context>

<pallas_src>
import functools
import numpy as np
import jax
import jax.numpy as jnp
from jax import lax
from jax.experimental import pallas as pl
from jax.experimental.pallas import tpu as pltpu


_SQRT2 = float(np.sqrt(2.0))

# VMEM budgets (bytes).  Conservative for v7x (64 MiB physical); v5e/v6e have 128 MiB,
# so the same numbers are always safe.
_VMEM_BUDGET = 40 * 1024 * 1024          # planning budget for all kernel buffers
_VMEM_LIMIT_CAP = 48 * 1024 * 1024       # max scoped-VMEM we ever request
_RESIDENT_WEIGHT_BYTES = 24 * 1024 * 1024  # double-buffer-accounted weight must fit this


# --------------------------------------------------------------------------------------
# Kernels
# --------------------------------------------------------------------------------------

def _apply_activation(z, activation):
    if activation == 'linear':
        return z
    if activation == 'lrelu':
        return jnp.where(z >= 0, z, jnp.float32(0.2) * z) * jnp.float32(_SQRT2)
    if activation == 'relu':
        return jnp.maximum(z, jnp.float32(0.0)) * jnp.float32(_SQRT2)
    raise NotImplementedError(activation)


def _fc_fused_kernel(*refs, weight_gain, bias_gain, activation, has_bias):
    """Weight-resident path: full-K contraction + gain + bias + activation in one step.

    refs = (x_ref, w_ref, [b_ref], o_ref)
    x tile: (tm, K); w tile: (tn, K) in native (out, in) layout.
    """
    x_ref, w_ref = refs[0], refs[1]
    b_ref = refs[2] if has_bias else None
    o_ref = refs[-1]

    # Contract the K (last) dim of both operands (x @ w.T) -> MXU, f32 accumulator.
    z = lax.dot_general(
        x_ref[...], w_ref[...],
        dimension_numbers=(((1,), (1,)), ((), ())),
        preferred_element_type=jnp.float32)
    z = z * jnp.float32(weight_gain)
    if has_bias:
        z = z + b_ref[...].astype(jnp.float32) * jnp.float32(bias_gain)
    z = _apply_activation(z, activation)
    o_ref[...] = z.astype(o_ref.dtype)


def _fc_tiled_kernel(*refs, weight_gain, bias_gain, activation, has_bias, acc_in_out):
    """Tiled fallback path with a K-reduction grid axis.

    refs = (x_ref, w_ref, [b_ref], o_ref, [acc_ref])
    If `acc_in_out`, the f32 output block itself is the accumulator (it is resident
    across the k axis), so no scratch is allocated.
    """
    idx = 0
    x_ref = refs[idx]; idx += 1
    w_ref = refs[idx]; idx += 1
    b_ref = None
    if has_bias:
        b_ref = refs[idx]; idx += 1
    o_ref = refs[idx]; idx += 1
    acc_ref = o_ref if acc_in_out else refs[idx]

    k = pl.program_id(2)

    @pl.when(k == 0)
    def _init():
        acc_ref[...] = jnp.zeros_like(acc_ref)

    acc_ref[...] += lax.dot_general(
        x_ref[...], w_ref[...],
        dimension_numbers=(((1,), (1,)), ((), ())),
        preferred_element_type=jnp.float32)

    @pl.when(k == pl.num_programs(2) - 1)
    def _epilogue():
        z = acc_ref[...].astype(jnp.float32) * jnp.float32(weight_gain)
        if has_bias:
            z = z + b_ref[...].astype(jnp.float32) * jnp.float32(bias_gain)
        z = _apply_activation(z, activation)
        o_ref[...] = z.astype(o_ref.dtype)


# --------------------------------------------------------------------------------------
# Tiling helpers
# --------------------------------------------------------------------------------------

def _round_up(v, m):
    return ((v + m - 1) // m) * m


def _choose_tile(dim, align, max_tile):
    """Return (tile, padded_dim): tile is a multiple of `align`, <= max(max_tile, align),
    and divides padded_dim."""
    d_pad = _round_up(dim, align)
    max_tile = max(max_tile, align)
    if d_pad <= max_tile:
        return d_pad, d_pad
    t = max_tile - (max_tile % align)
    while t >= align:
        if d_pad % t == 0:
            return t, d_pad
        t -= align
    return align, d_pad  # unreachable: align always divides d_pad


def _sublane_align(dtype):
    # Sublane packing factor: 8 rows (f32), 16 (bf16/f16), 32 (int8/fp8).
    return max(8, 32 // jnp.dtype(dtype).itemsize)


# --------------------------------------------------------------------------------------
# Wrapper
# --------------------------------------------------------------------------------------

def fully_connected_layer(x, weight, bias=None, *, lr_multiplier=1.0,
                          activation='linear', _force_tiled=False, _tk_cap=None):
    """x: (M, in_features); weight: (out_features, in_features) (PyTorch layout,
    NOT transposed); bias: (out_features,) or None."""
    if activation not in ('linear', 'lrelu', 'relu'):
        # TODO(synk): other bias_act activations (sigmoid/tanh/softplus/swish) not wired up.
        raise NotImplementedError(activation)

    M, K = x.shape
    N, K2 = weight.shape
    assert K == K2, (K, K2)
    weight_gain = float(lr_multiplier) / float(np.sqrt(K))
    bias_gain = float(lr_multiplier)
    has_bias = bias is not None

    # Matches `weight.to(x.dtype)`; bf16 x => bf16 weight straight into the MXU.
    if weight.dtype != x.dtype:
        weight = weight.astype(x.dtype)

    itemsize = jnp.dtype(x.dtype).itemsize
    align_m = _sublane_align(x.dtype)

    cost = pl.CostEstimate(
        flops=2 * M * N * K,
        transcendentals=0,
        bytes_accessed=(M * K + N * K + M * N + (N if has_bias else 0)) * itemsize)

    if not _force_tiled:
        out = _fc_weight_resident(x, weight, bias, weight_gain, bias_gain, activation,
                                  align_m, itemsize, cost, has_bias)
        if out is not None:
            return out
    return _fc_tiled(x, weight, bias, weight_gain, bias_gain, activation,
                     align_m, itemsize, cost, has_bias, tk_cap_override=_tk_cap)


def _fc_weight_resident(x, weight, bias, weight_gain, bias_gain, activation,
                        align_m, itemsize, cost, has_bias):
    """Weight-resident path: weight is one (or two) VMEM block(s), grid over M (x N)."""
    M, K = x.shape
    N, _ = weight.shape

    w_bytes = 2 * N * K * itemsize                       # double-buffer accounting
    if w_bytes > _RESIDENT_WEIGHT_BYTES:
        return None

    # Per-M-row streaming cost (x row in + out row out, each double buffered).
    row_bytes = 2 * (K + N) * itemsize
    tm_cap = max(align_m,
                 (((_VMEM_BUDGET - w_bytes) // row_bytes) // align_m) * align_m)
    tm_cap = min(tm_cap, 512)
    if M <= tm_cap:
        tm, M_pad = M, M        # full-extent block: exempt from (8,128) rule, no padding
    else:
        tm, M_pad = _choose_tile(M, align_m, tm_cap)
    grid_m = M_pad // tm

    # v7x megacore: if the grid would otherwise be a single step, split N in two so both
    # TensorCores get work (only when the halves stay 128-lane aligned).
    grid_n = 2 if (grid_m == 1 and N >= 512 and N % 256 == 0) else 1
    tn = N // grid_n

    est = w_bytes + 2 * itemsize * (tm * K + tm * tn + tn)
    if est > _VMEM_BUDGET:
        return None

    x_p = x if M_pad == M else jnp.pad(x, ((0, M_pad - M), (0, 0)))

    in_specs = [
        pl.BlockSpec((tm, K), lambda i, j: (i, 0)),      # x: streamed over M
        pl.BlockSpec((tn, K), lambda i, j: (j, 0)),      # weight: VMEM-resident block(s)
    ]
    inputs = [x_p, weight]
    if has_bias:
        in_specs.append(pl.BlockSpec((1, tn), lambda i, j: (0, j)))
        inputs.append(bias.reshape(1, N))

    kernel = functools.partial(
        _fc_fused_kernel, weight_gain=weight_gain, bias_gain=bias_gain,
        activation=activation, has_bias=has_bias)

    vmem_limit = min(_VMEM_LIMIT_CAP, max(32 * 1024 * 1024, int(est * 1.3)))

    out = pl.pallas_call(
        kernel,
        out_shape=jax.ShapeDtypeStruct((M_pad, N), x.dtype),
        grid_spec=pltpu.PrefetchScalarGridSpec(
            num_scalar_prefetch=0,
            grid=(grid_m, grid_n),
            in_specs=in_specs,
            out_specs=pl.BlockSpec((tm, tn), lambda i, j: (i, j)),
        ),
        compiler_params=pltpu.CompilerParams(
            dimension_semantics=("parallel", "parallel"),
            vmem_limit_bytes=vmem_limit,
        ),
        cost_estimate=cost,
    )(*inputs)

    if M_pad != M:
        out = out[:M]
    return out


def _fc_tiled(x, weight, bias, weight_gain, bias_gain, activation,
              align_m, itemsize, cost, has_bias, tk_cap_override=None):
    """Tiled (M, N, K) fallback for weights too large to sit resident in VMEM."""
    M, K = x.shape
    N, _ = weight.shape

    if M <= 512:
        tm, M_pad = M, M          # full-extent sublane dim: exempt from (8,128), no pad
    else:
        tm, M_pad = _choose_tile(M, align_m, 512)
    tn, N_pad = _choose_tile(N, 128, 512)

    # tk as large as the streaming budget allows (ideally the full K): fewer reduction
    # steps => less accumulator read-modify-write traffic and fewer grid-step overheads.
    tk_cap = (28 * 1024 * 1024) // (2 * (tm + tn) * itemsize)
    tk_cap = max(128, (tk_cap // 128) * 128)
    if tk_cap_override is not None:
        tk_cap = max(128, min(tk_cap, (tk_cap_override // 128) * 128))
    tk, K_pad = _choose_tile(K, 128, tk_cap)

    # TODO(synk): for a real module, pad / lay out the static weight once at parameter
    # setup time instead of in the per-call hot path (this branch is only hit for
    # weights that are too big to be VMEM-resident anyway).
    x_p = x if (M_pad == M and K_pad == K) else jnp.pad(
        x, ((0, M_pad - M), (0, K_pad - K)))
    w_p = weight if (N_pad == N and K_pad == K) else jnp.pad(
        weight, ((0, N_pad - N), (0, K_pad - K)))

    grid = (M_pad // tm, N_pad // tn, K_pad // tk)

    # f32 outputs accumulate directly into the resident output block (no scratch).
    acc_in_out = jnp.dtype(x.dtype) == jnp.dtype(jnp.float32)

    in_specs = [
        pl.BlockSpec((tm, tk), lambda i, j, k: (i, k)),   # x
        pl.BlockSpec((tn, tk), lambda i, j, k: (j, k)),   # weight (out, in)
    ]
    inputs = [x_p, w_p]
    if has_bias:
        b_p = bias.reshape(1, N)
        if N_pad != N:
            b_p = jnp.pad(b_p, ((0, 0), (0, N_pad - N)))
        in_specs.append(pl.BlockSpec((1, tn), lambda i, j, k: (0, j)))
        inputs.append(b_p)

    scratch_shapes = [] if acc_in_out else [pltpu.VMEM((tm, tn), jnp.float32)]

    est = 2 * itemsize * (tm * tk + tn * tk + tm * tn + tn)
    if not acc_in_out:
        est += tm * tn * 4
    vmem_limit = min(_VMEM_LIMIT_CAP, max(32 * 1024 * 1024, int(est * 1.3)))

    kernel = functools.partial(
        _fc_tiled_kernel, weight_gain=weight_gain, bias_gain=bias_gain,
        activation=activation, has_bias=has_bias, acc_in_out=acc_in_out)

    out = pl.pallas_call(
        kernel,
        out_shape=jax.ShapeDtypeStruct((M_pad, N_pad), x.dtype),
        grid_spec=pltpu.PrefetchScalarGridSpec(
            num_scalar_prefetch=0,
            grid=grid,
            in_specs=in_specs,
            out_specs=pl.BlockSpec((tm, tn), lambda i, j, k: (i, j)),
            scratch_shapes=scratch_shapes,
        ),
        compiler_params=pltpu.CompilerParams(
            dimension_semantics=("parallel", "parallel", "arbitrary"),
            vmem_limit_bytes=vmem_limit,
        ),
        cost_estimate=cost,
    )(*inputs)

    if M_pad != M or N_pad != N:
        out = out[:M, :N]
    return out


# --------------------------------------------------------------------------------------
# Reference + self-test
# --------------------------------------------------------------------------------------

def _reference(x, weight, bias, lr_multiplier, activation):
    weight_gain = lr_multiplier / np.sqrt(x.shape[1])
    w = weight.astype(x.dtype) * jnp.asarray(weight_gain, x.dtype)
    y = jnp.matmul(x, w.T, precision=lax.Precision.HIGHEST)
    if bias is not None:
        y = y + (bias.astype(x.dtype) * lr_multiplier)[None, :]
    if activation == 'lrelu':
        y = jnp.where(y >= 0, y, 0.2 * y) * np.sqrt(2.0)
    elif activation == 'relu':
        y = jnp.maximum(y, 0.0) * np.sqrt(2.0)
    return y


if __name__ == "__main__":
    key = jax.random.PRNGKey(0)
    k_x, k_w, k_x2, k_w2 = jax.random.split(key, 4)

    # Case 1: mapping-network style FC (lrelu, lr_multiplier=0.01, bias_init=1).
    # Exercises the weight-resident fused path with full-extent (unpadded) blocks.
    batch, in_features, out_features = 8, 32, 64
    lr_multiplier = 0.01
    x = jax.random.normal(k_x, (batch, in_features), dtype=jnp.float32)
    weight = jax.random.normal(k_w, (out_features, in_features),
                               dtype=jnp.float32) / lr_multiplier
    bias = jnp.full((out_features,), np.float32(1.0))

    y = fully_connected_layer(x, weight, bias,
                              lr_multiplier=lr_multiplier, activation='lrelu')
    y = jax.block_until_ready(y)
    y_ref = _reference(x, weight, bias, lr_multiplier, 'lrelu')
    np.testing.assert_allclose(np.asarray(y), np.asarray(y_ref),
                               rtol=1e-4, atol=1e-3)

    # Case 2: pure-linear + bias path (the torch.addmm branch).
    y_lin = fully_connected_layer(x, weight, bias,
                                  lr_multiplier=lr_multiplier, activation='linear')
    y_lin = jax.block_until_ready(y_lin)
    y_lin_ref = _reference(x, weight, bias, lr_multiplier, 'linear')
    np.testing.assert_allclose(np.asarray(y_lin), np.asarray(y_lin_ref),
                               rtol=1e-4, atol=1e-3)

    # Case 3: no-bias relu, forced onto the tiled K-accumulation path
    # (grid = (1, 1, 2), f32 output used directly as the accumulator).
    M2, K2, N2 = 64, 1024, 384
    x2 = jax.random.normal(k_x2, (M2, K2), dtype=jnp.float32)
    w2 = jax.random.normal(k_w2, (N2, K2), dtype=jnp.float32)
    y2 = fully_connected_layer(x2, w2, None, lr_multiplier=1.0, activation='relu',
                               _force_tiled=True, _tk_cap=512)
    y2 = jax.block_until_ready(y2)
    y2_ref = _reference(x2, w2, None, 1.0, 'relu')
    np.testing.assert_allclose(np.asarray(y2), np.asarray(y2_ref),
                               rtol=1e-4, atol=1e-3)

    print("KERNEL_OK")
</pallas_src>

<mosaic_0001>
module attributes {stable_mosaic.version = 11 : i64} {
  func.func @_fc_fused_kernel(%arg0: i32, %arg1: i32, %arg2: memref<8x32xf32, #tpu.memory_space<vmem>>, %arg3: memref<64x32xf32, #tpu.memory_space<vmem>>, %arg4: memref<1x64xf32, #tpu.memory_space<vmem>>, %arg5: memref<8x64xf32, #tpu.memory_space<vmem>>) attributes {dimension_semantics = [#tpu.dimension_semantics<parallel>, #tpu.dimension_semantics<parallel>], iteration_bounds = array<i64: 1, 1>, scalar_prefetch = 0 : i64, scratch_operands = 0 : i64, tpu.core_type = #tpu.core_type<tc>, window_params = [{transform_indices = @transform_0, window_bounds = array<i64: 8, 32>}, {transform_indices = @transform_1, window_bounds = array<i64: 64, 32>}, {transform_indices = @transform_2, window_bounds = array<i64: 1, 64>}, {transform_indices = @transform_3, window_bounds = array<i64: 8, 64>}]} {
    %c0 = arith.constant 0 : index
    %c0_0 = arith.constant 0 : index
    %0 = vector.load %arg2[%c0, %c0_0] : memref<8x32xf32, #tpu.memory_space<vmem>>, vector<8x32xf32>
    %c0_1 = arith.constant 0 : index
    %c0_2 = arith.constant 0 : index
    %1 = vector.load %arg3[%c0_1, %c0_2] : memref<64x32xf32, #tpu.memory_space<vmem>>, vector<64x32xf32>
    %cst = arith.constant dense<0.000000e+00> : vector<8x64xf32>
    %2 = tpu.matmul %0, %1, %cst {dimension_numbers = #tpu.dot_dimension_numbers<[1], [1], [0], [0], [0, 0, 1, 0], [], []>} : vector<8x32xf32>, vector<64x32xf32>, vector<8x64xf32> -> vector<8x64xf32>
    %cst_3 = arith.constant 0.00176776689 : f32
    %3 = vector.broadcast %cst_3 : f32 to vector<8x64xf32>
    %4 = arith.mulf %2, %3 : vector<8x64xf32>
    %c0_4 = arith.constant 0 : index
    %c0_5 = arith.constant 0 : index
    %5 = vector.load %arg4[%c0_4, %c0_5] : memref<1x64xf32, #tpu.memory_space<vmem>>, vector<1x64xf32>
    %cst_6 = arith.constant 0.00999999977 : f32
    %6 = vector.broadcast %cst_6 : f32 to vector<1x64xf32>
    %7 = arith.mulf %5, %6 : vector<1x64xf32>
    %8 = vector.broadcast %7 : vector<1x64xf32> to vector<8x64xf32>
    %9 = arith.addf %4, %8 : vector<8x64xf32>
    %cst_7 = arith.constant 0.000000e+00 : f32
    %10 = vector.broadcast %cst_7 : f32 to vector<8x64xf32>
    %11 = arith.cmpf oge, %9, %10 : vector<8x64xf32>
    %cst_8 = arith.constant 2.000000e-01 : f32
    %12 = vector.broadcast %cst_8 : f32 to vector<8x64xf32>
    %13 = arith.mulf %12, %9 : vector<8x64xf32>
    %14 = arith.select %11, %9, %13 : vector<8x64xi1>, vector<8x64xf32>
    %cst_9 = arith.constant 1.41421354 : f32
    %15 = vector.broadcast %cst_9 : f32 to vector<8x64xf32>
    %16 = arith.mulf %14, %15 : vector<8x64xf32>
    %c0_10 = arith.constant 0 : index
    %c0_11 = arith.constant 0 : index
    %17 = vector.load %arg5[%c0_10, %c0_11] : memref<8x64xf32, #tpu.memory_space<vmem>>, vector<8x64xf32>
    tpu.vector_store %arg5[%c0_10, %c0_11], %16 {strides = array<i32>} : memref<8x64xf32, #tpu.memory_space<vmem>>, vector<8x64xf32>,
    return
  }
  func.func @transform_0(%arg0: i32, %arg1: i32) -> (i32, i32) {
    %c0_i32 = arith.constant 0 : i32
    %c0_i32_0 = arith.constant 0 : i32
    return %arg0, %c0_i32 : i32, i32
  }
  func.func @transform_1(%arg0: i32, %arg1: i32) -> (i32, i32) {
    %c0_i32 = arith.constant 0 : i32
    %c0_i32_0 = arith.constant 0 : i32
    return %arg1, %c0_i32 : i32, i32
  }
  func.func @transform_2(%arg0: i32, %arg1: i32) -> (i32, i32) {
    %c0_i32 = arith.constant 0 : i32
    %c0_i32_0 = arith.constant 0 : i32
    return %c0_i32, %arg1 : i32, i32
  }
  func.func @transform_3(%arg0: i32, %arg1: i32) -> (i32, i32) {
    %c0_i32 = arith.constant 0 : i32
    return %arg0, %arg1 : i32, i32
  }
}

</mosaic_0001>

<llo_original>
// kernel: tpu_custom_call.1
$region0: #{tpu_custom_call.1}
  #allocation0 [shape = 'u32[]', space=smem, size = 0x4, offset = 0x4, fixed_abs, tag = 'smem constant byte address 0x4 - core index']
  #allocation1 [shape = 'u32[144,128]{1,0:T(1,128)}', space=vmem, size = 0x12000, scoped, tag = 'internal scratch']
  %s0 = inlined_call_operand.vmem [shape: f32[8,32], index: 0, kind: input, shape index: {}]
  %s1 = inlined_call_operand.vmem [shape: f32[64,32], index: 1, kind: input, shape index: {}]
  %s2 = inlined_call_operand.vmem [shape: f32[1,64], index: 2, kind: input, shape index: {}]
  %s3 = inlined_call_operand.hbm [shape: f32[8,64], index: 3, kind: output, shape index: {}]
  %s4 = sld [smem:[#allocation0]]
  $region22: #{tpu_custom_call.1} parent=0
    _
  %s6 = ssub.s32 1, %s4
  %s7 = scalar_select 0, %s6, %s4
  $region1: #{tpu_custom_call.1} parent=0
    #allocation2 [shape = 'u8[4096]{0}', space=vmem, size = 0x1000, scoped, tag = 'output window, operand 0, single buffered']
    #allocation3 [shape = 's32[1]{0}', space=sflag, size = 0x4, scoped, tag = 'scoped memory for tpu_custom_call.1']
    %8 = vsyncpa [#allocation3], 0
    // Predicated region
    $region2: #{tpu_custom_call.1} parent=1 // pred_check
      _
    $region3: #{tpu_custom_call.1} parent=1 // pred_check_branch
      %10 = sbr.rel (0) target = $region5
    $region4: #{tpu_custom_call.1} parent=1 // pred_region
      _
    $region5: #{tpu_custom_call.1} parent=1 // pred_fallthru
      _
    // Predicated region
    $region6: #{tpu_custom_call.1} parent=1 // pred_check
      _
    $region7: #{tpu_custom_call.1} parent=1 // pred_check_branch
      %12 = sbr.rel (0) target = $region9
    $region8: #{tpu_custom_call.1} parent=1 // pred_region
      _
    $region9: #{tpu_custom_call.1} parent=1 // pred_fallthru
      _
    // Predicated region
    $region10: #{tpu_custom_call.1} parent=1 // pred_check
      _
    $region11: #{tpu_custom_call.1} parent=1 // pred_check_branch
      %14 = sbr.rel (0) target = $region13
    $region12: #{tpu_custom_call.1} parent=1 // pred_region
      _
    $region13: #{tpu_custom_call.1} parent=1 // pred_fallthru
      _
    %v15 = vld [vmem:[%s0] sm:$0xff]
    %v16 = vld [vmem:[%s1] sm:$0xff]
    %v17 = vld [vmem:[%s1 + $0x8] sm:$0xff]
    %v18 = vld [vmem:[%s1 + $0x10] sm:$0xff]
    %v19 = vld [vmem:[%s1 + $0x18] sm:$0xff]
    %v20 = vld [vmem:[%s1 + $0x20] sm:$0xff]
    %v21 = vld [vmem:[%s1 + $0x28] sm:$0xff]
    %v22 = vld [vmem:[%s1 + $0x30] sm:$0xff]
    %v23 = vld [vmem:[%s1 + $0x38] sm:$0xff]
    %vm24 = vcmask 261120
    %v26 = vsel %vm24, %v15, 0
    %v29 = vsel %vm24, %v16, 0
    %v32 = vsel %vm24, %v17, 0
    %v35 = vsel %vm24, %v18, 0
    %v38 = vsel %vm24, %v19, 0
    %v41 = vsel %vm24, %v20, 0
    %v44 = vsel %vm24, %v21, 0
    %v47 = vsel %vm24, %v22, 0
    %v50 = vsel %vm24, %v23, 0
    %52 = vmatprep.subr.mxu0 0.0
    %53 = vmatpush1.xpose.msra.mxu0 %v29
    %54 = vmatprep.subr.mxu0 0.0
    %55 = vmatpush1.xpose.msra.mxu0 %v32
    %56 = vmatprep.subr.mxu0 0.0
    %57 = vmatpush1.xpose.msra.mxu0 %v35
    %58 = vmatprep.subr.mxu0 0.0
    %59 = vmatpush1.xpose.msra.mxu0 %v38
    %60 = vmatprep.subr.mxu0 0.0
    %61 = vmatpush1.xpose.msra.mxu0 %v41
    %62 = vmatprep.subr.mxu0 0.0
    %63 = vmatpush1.xpose.msra.mxu0 %v44
    %64 = vmatprep.subr.mxu0 0.0
    %65 = vmatpush1.xpose.msra.mxu0 %v47
    %66 = vmatprep.subr.mxu0 0.0
    %67 = vmatpush1.xpose.msra.mxu0 %v50
    %68 = vmatprep.subr.mxu0 0.0
    %69 = vmatpush1.xpose.msra.mxu0 0.0
    %70 = vmatprep.subr.mxu0 0.0
    %71 = vmatpush1.xpose.msra.mxu0 0.0
    %72 = vmatprep.subr.mxu0 0.0
    %73 = vmatpush1.xpose.msra.mxu0 0.0
    %74 = vmatprep.subr.mxu0 0.0
    %75 = vmatpush1.xpose.msra.mxu0 0.0
    %76 = vmatprep.subr.mxu0 0.0
    %77 = vmatpush1.xpose.msra.mxu0 0.0
    %78 = vmatprep.subr.mxu0 0.0
    %79 = vmatpush1.xpose.msra.mxu0 0.0
    %80 = vmatprep.subr.mxu0 0.0
    %81 = vmatpush1.xpose.msra.mxu0 0.0
    %82 = vmatprep.subr.mxu0 0.0
    %83 = vmatpush1.xpose.msra.mxu0 0.0
    %84 = vmatprep.subr.mxu0 0.0
    %85 = vmatpush1.xpose.msra.mxu0 0.0
    %86 = vmatprep.subr.mxu0 0.0
    %87 = vmatpush1.xpose.msra.mxu0 0.0
    %88 = vmatprep.subr.mxu0 0.0
    %89 = vmatpush1.xpose.msra.mxu0 0.0
    %90 = vmatprep.subr.mxu0 0.0
    %91 = vmatpush1.xpose.msra.mxu0 0.0
    %92 = vmatprep.subr.mxu0 0.0
    %93 = vmatpush1.xpose.msra.mxu0 0.0
    %94 = vmatprep.subr.mxu0 0.0
    %95 = vmatpush1.xpose.msra.mxu0 0.0
    %96 = vmatprep.subr.mxu0 0.0
    %97 = vmatpush1.xpose.msra.mxu0 0.0
    %98 = vmatprep.subr.mxu0 0.0
    %99 = vmatpush1.xpose.msra.mxu0 0.0
    %100 = vmatprep.subr.mxu0 0.0
    %101 = vmatpush1.xpose.msra.mxu0 0.0
    %102 = vmatprep.subr.mxu0 0.0
    %103 = vmatpush1.xpose.msra.mxu0 0.0
    %104 = vmatprep.subr.mxu0 0.0
    %105 = vmatpush1.xpose.msra.mxu0 0.0
    %106 = vmatprep.subr.mxu0 0.0
    %107 = vmatpush1.xpose.msra.mxu0 0.0
    %108 = vmatprep.subr.mxu0 0.0
    %109 = vmatpush1.xpose.msra.mxu0 0.0
    %110 = vmatprep.subr.mxu0 0.0
    %111 = vmatpush1.xpose.msra.mxu0 0.0
    %112 = vmatprep.subr.mxu0 0.0
    %113 = vmatpush1.xpose.msra.mxu0 0.0
    %114 = vmatprep.subr.mxu0 0.0
    %115 = vmatpush1.xpose.msra.mxu0 0.0
    %116 = vmatprep.mubr.f32.mxu0 0.0
    %117 = vmatmul.mubr.f32.gmra.mrb[0].mxu0 %v26
    %v118 = vpop.f32.mrb[0].mxu0
    %v119 = vadd.f32 0.0, %v118
    %v120 = vpop.f32.mrb[0].mxu0
    %121 = vdwg.mxu0
    %v122 = vmul.f32 %v119, 0.0017677669
    %v123 = vld [vmem:[%s2] sm:$0x1]
    %v124 = vmul.f32 %v123, 0.01
    %v126 = vlaneseq
    %v127 = vshrl.u32 %v126, 7
    %v128 = vsub.s32 0, %v127
    %v129 = vrot.slane %v124, %v128
    %v131 = vadd.f32 %v122, %v129
    %vm132 = vcmp.ge.f32.partialorder %v131, 0.0
    %v133 = vmul.f32 %v131, 0.2
    %v134 = vsel %vm132, %v131, %v133
    %v135 = vmul.f32 %v134, 1.4142135
    %vm136 = vcmask 523264
    %137 = vst.msk [vmem:[#allocation2] sm:$0xff] %vm136, %v135
    // Predicated region
    $region14: #{tpu_custom_call.1} parent=1 // pred_check
      _
    $region15: #{tpu_custom_call.1} parent=1 // pred_check_branch
      %139 = sbr.rel (0) target = $region17
    $region16: #{tpu_custom_call.1} parent=1 // pred_region
      %s141 = ssub.s32 128, 128
      %142 = vsyncadd [#allocation3], %s141
      %s144 = sshll.u32 [#allocation2], 4
      %s145 = int_to_ptr.vmem [resolvable:$true] %s144
      %147 = dma.vmem_to_hbm [thread:$0]  %s145, 128, %s3, [#allocation3]
    $region17: #{tpu_custom_call.1} parent=1 // pred_fallthru
      _
    // Predicated region
    $region18: #{tpu_custom_call.1} parent=1 // pred_check
      _
    $region19: #{tpu_custom_call.1} parent=1 // pred_check_branch
      %149 = sbr.rel (0) target = $region21
    $region20: #{tpu_custom_call.1} parent=1 // pred_region
      %150 = dma.done [#allocation3], 128
    $region21: #{tpu_custom_call.1} parent=1 // pred_fallthru
      _
    %151 = vsyncpa [#allocation3], 1

</llo_original>
